<compile_context>
chip_gen: v7x
topology: tpu7x:2x2x1
jax: 0.10.0
libtpu: 0.0.40
codegen_flags: <defaults>
</compile_context>

<pallas_src>
import jax
import jax.numpy as jnp
from jax.experimental import pallas as pl
from jax.experimental.pallas import tpu as pltpu

# Target size for one output block: big enough to amortize the ~0.35 us
# per-grid-step overhead, small enough that double-buffered in+out blocks
# stay well inside VMEM on every generation (including v7x's 64 MiB).
_TARGET_OUT_BLOCK_BYTES = 4 * 1024 * 1024


def _concat_rows_kernel(x1_ref, x2_ref, o_ref):
    # x1_ref, x2_ref: (bn, L); o_ref: (bn, 3L).  Fully lane-dense stores.
    L = x1_ref.shape[-1]
    x1 = x1_ref[...]
    o_ref[:, 0:L] = x1
    o_ref[:, L:2 * L] = x2_ref[...]
    o_ref[:, 2 * L:3 * L] = x1


def _concat_lanes_kernel(x1_ref, x2_ref, o_ref):
    # x1_ref, x2_ref: (1, 1, T); o_ref: (1, 3, T).  Only used when a single
    # batch row is too large for one block; T is a multiple of 128.
    x1 = x1_ref[...]
    o_ref[:, 0:1, :] = x1
    o_ref[:, 1:2, :] = x2_ref[...]
    o_ref[:, 2:3, :] = x1


def _pick_batch_block(n: int, out_row_bytes: int) -> int:
    """Number of batch rows per block (must divide n)."""
    total = n * out_row_bytes
    if total <= 2 * _TARGET_OUT_BLOCK_BYTES:
        return n  # whole problem in a single grid step
    best = None
    b = 8  # prefer multiple-of-8 sublane blocks
    while b <= n:
        if n % b == 0 and b * out_row_bytes <= _TARGET_OUT_BLOCK_BYTES:
            best = b
        b += 8
    return best if best is not None else n


def _pick_lane_tile(chw: int, itemsize: int) -> int:
    """Largest multiple-of-128 divisor of chw with a ~TARGET-sized out block."""
    best = chw
    cand = 128
    while cand <= chw:
        if chw % cand == 0 and 3 * cand * itemsize <= _TARGET_OUT_BLOCK_BYTES:
            best = cand
        cand += 128
    return best


def model_forward(x1, x2):
    assert x1.shape == x2.shape and x1.dtype == x2.dtype
    n, c, h, w = x1.shape
    chw = c * h * w
    itemsize = jnp.dtype(x1.dtype).itemsize

    # x1 read once, x2 read once, 3*chw written per batch row.
    bytes_accessed = 5 * n * chw * itemsize
    cost = pl.CostEstimate(
        flops=0, transcendentals=0, bytes_accessed=bytes_accessed)

    out_row_bytes = 3 * chw * itemsize

    if out_row_bytes > _TARGET_OUT_BLOCK_BYTES and chw % 128 == 0:
        # A single batch row is already huge -> tile along the lane dim using
        # an (N, 3, C*HW) output view (row-major identical to (N, 3C, H, W)).
        tile = _pick_lane_tile(chw, itemsize)
        x1f = x1.reshape(n, 1, chw)
        x2f = x2.reshape(n, 1, chw)
        grid = (n, chw // tile)
        in_spec = pl.BlockSpec((1, 1, tile), lambda i, j: (i, 0, j))
        out_spec = pl.BlockSpec((1, 3, tile), lambda i, j: (i, 0, j))
        out_shape = jax.ShapeDtypeStruct((n, 3, chw), x1.dtype)
        kernel = _concat_lanes_kernel
        in_block_bytes = tile * itemsize
        out_block_bytes = 3 * tile * itemsize
        dims = ("parallel", "parallel")
    else:
        # Lane-major path: (N, C*HW) inputs, (N, 3*C*HW) output; group whole
        # batch rows per block (single step for small workloads).
        block_n = _pick_batch_block(n, out_row_bytes)
        x1f = x1.reshape(n, chw)
        x2f = x2.reshape(n, chw)
        grid = (n // block_n,)
        in_spec = pl.BlockSpec((block_n, chw), lambda i: (i, 0))
        out_spec = pl.BlockSpec((block_n, 3 * chw), lambda i: (i, 0))
        out_shape = jax.ShapeDtypeStruct((n, 3 * chw), x1.dtype)
        kernel = _concat_rows_kernel
        in_block_bytes = block_n * chw * itemsize
        out_block_bytes = block_n * 3 * chw * itemsize
        dims = ("parallel",)

    # Double-buffered working set (2 inputs + 1 output); leave headroom but
    # stay below v7x's 64 MiB physical VMEM.
    working = 2 * (2 * in_block_bytes + out_block_bytes)
    vmem_limit = int(min(max(2 * working, 32 * 1024 * 1024),
                         60 * 1024 * 1024))

    out = pl.pallas_call(
        kernel,
        out_shape=out_shape,
        grid_spec=pltpu.PrefetchScalarGridSpec(
            num_scalar_prefetch=0,
            grid=grid,
            in_specs=[in_spec, in_spec],
            out_specs=out_spec,
        ),
        compiler_params=pltpu.CompilerParams(
            dimension_semantics=dims,
            vmem_limit_bytes=vmem_limit),
        cost_estimate=cost,
    )(x1f, x2f)

    return out.reshape(n, 3 * c, h, w)


if __name__ == "__main__":
    key = jax.random.PRNGKey(0)
    k1, k2 = jax.random.split(key)

    # Small test shape consistent with the module's NCHW inputs; C*H*W = 768
    # is a multiple of 128 (lane-dense), like the real 3*64*64 = 12288.
    x1 = jax.random.normal(k1, (2, 3, 16, 16), dtype=jnp.float32)
    x2 = jax.random.normal(k2, (2, 3, 16, 16), dtype=jnp.float32)
    out = jax.block_until_ready(model_forward(x1, x2))
    ref = jnp.concatenate([x1, x2, x1], axis=1)
    assert out.shape == ref.shape, (out.shape, ref.shape)
    assert jnp.array_equal(out, ref), "mismatch vs reference (small shape)"

    # Also exercise the module's real shape (single-grid-step path).
    y1 = jax.random.normal(k1, (1, 3, 64, 64), dtype=jnp.float32)
    y2 = jax.random.normal(k2, (1, 3, 64, 64), dtype=jnp.float32)
    out2 = jax.block_until_ready(model_forward(y1, y2))
    ref2 = jnp.concatenate([y1, y2, y1], axis=1)
    assert out2.shape == ref2.shape, (out2.shape, ref2.shape)
    assert jnp.array_equal(out2, ref2), "mismatch vs reference (model shape)"

    print("KERNEL_OK")
</pallas_src>

<mosaic_0001>
module attributes {stable_mosaic.version = 11 : i64} {
  func.func @_concat_rows_kernel(%arg0: i32, %arg1: memref<2x768xf32, #tpu.memory_space<vmem>>, %arg2: memref<2x768xf32, #tpu.memory_space<vmem>>, %arg3: memref<2x2304xf32, #tpu.memory_space<vmem>>) attributes {dimension_semantics = [#tpu.dimension_semantics<parallel>], iteration_bounds = array<i64: 1>, scalar_prefetch = 0 : i64, scratch_operands = 0 : i64, tpu.core_type = #tpu.core_type<tc>, window_params = [{transform_indices = @transform_0, window_bounds = array<i64: 2, 768>}, {transform_indices = @transform_1, window_bounds = array<i64: 2, 768>}, {transform_indices = @transform_2, window_bounds = array<i64: 2, 2304>}]} {
    %c0 = arith.constant 0 : index
    %c0_0 = arith.constant 0 : index
    %0 = vector.load %arg1[%c0, %c0_0] : memref<2x768xf32, #tpu.memory_space<vmem>>, vector<2x768xf32>
    %c0_1 = arith.constant 0 : index
    %c0_2 = arith.constant 0 : index
    %1 = vector.load %arg3[%c0_1, %c0_2] : memref<2x2304xf32, #tpu.memory_space<vmem>>, vector<2x768xf32>
    tpu.vector_store %arg3[%c0_1, %c0_2], %0 {strides = array<i32>} : memref<2x2304xf32, #tpu.memory_space<vmem>>, vector<2x768xf32>,
    %c0_3 = arith.constant 0 : index
    %c0_4 = arith.constant 0 : index
    %2 = vector.load %arg2[%c0_3, %c0_4] : memref<2x768xf32, #tpu.memory_space<vmem>>, vector<2x768xf32>
    %c0_5 = arith.constant 0 : index
    %c768 = arith.constant 768 : index
    %3 = vector.load %arg3[%c0_5, %c768] : memref<2x2304xf32, #tpu.memory_space<vmem>>, vector<2x768xf32>
    tpu.vector_store %arg3[%c0_5, %c768], %2 {strides = array<i32>} : memref<2x2304xf32, #tpu.memory_space<vmem>>, vector<2x768xf32>,
    %c0_6 = arith.constant 0 : index
    %c1536 = arith.constant 1536 : index
    %4 = vector.load %arg3[%c0_6, %c1536] : memref<2x2304xf32, #tpu.memory_space<vmem>>, vector<2x768xf32>
    tpu.vector_store %arg3[%c0_6, %c1536], %0 {strides = array<i32>} : memref<2x2304xf32, #tpu.memory_space<vmem>>, vector<2x768xf32>,
    return
  }
  func.func @transform_0(%arg0: i32) -> (i32, i32) {
    %c0_i32 = arith.constant 0 : i32
    %c0_i32_0 = arith.constant 0 : i32
    return %arg0, %c0_i32 : i32, i32
  }
  func.func @transform_1(%arg0: i32) -> (i32, i32) {
    %c0_i32 = arith.constant 0 : i32
    %c0_i32_0 = arith.constant 0 : i32
    return %arg0, %c0_i32 : i32, i32
  }
  func.func @transform_2(%arg0: i32) -> (i32, i32) {
    %c0_i32 = arith.constant 0 : i32
    %c0_i32_0 = arith.constant 0 : i32
    return %arg0, %c0_i32 : i32, i32
  }
}

</mosaic_0001>

<llo_original>
// kernel: tpu_custom_call.1
$region0: #{tpu_custom_call.1}
  #allocation0 [shape = 'u32[]', space=smem, size = 0x4, offset = 0x4, fixed_abs, tag = 'smem constant byte address 0x4 - core index']
  #allocation1 [shape = 'u32[144,128]{1,0:T(1,128)}', space=vmem, size = 0x12000, scoped, tag = 'internal scratch']
  %s0 = inlined_call_operand.hbm [shape: f32[2,768], index: 0, kind: input, shape index: {}]
  %s1 = inlined_call_operand.hbm [shape: f32[2,768], index: 1, kind: input, shape index: {}]
  %s2 = inlined_call_operand.hbm [shape: f32[2,2304], index: 2, kind: output, shape index: {}]
  %s3 = sld [smem:[#allocation0]]
  $region26: #{tpu_custom_call.1} parent=0
    _
  %s5 = ssub.s32 1, %s3
  %s6 = scalar_select 0, %s5, %s3
  $region1: #{tpu_custom_call.1} parent=0
    #allocation2 [shape = 'u8[6144]{0}', space=vmem, size = 0x1800, scoped, tag = 'input window, operand 0, single buffered']
    #allocation3 [shape = 's32[1]{0}', space=sflag, size = 0x4, scoped, tag = 'scoped memory for tpu_custom_call.1']
    #allocation4 [shape = 's32[1]{0}', space=sflag, size = 0x4, scoped, tag = 'scoped memory for tpu_custom_call.1']
    #allocation5 [shape = 'u8[6144]{0}', space=vmem, size = 0x1800, scoped, tag = 'input window, operand 1, single buffered']
    #allocation6 [shape = 's32[1]{0}', space=sflag, size = 0x4, scoped, tag = 'scoped memory for tpu_custom_call.1']
    #allocation7 [shape = 'u8[18432]{0}', space=vmem, size = 0x4800, scoped, tag = 'output window, operand 0, single buffered']
    %7 = vsyncpa [#allocation3], 0
    %8 = vsyncpa [#allocation6], 0
    %9 = vsyncpa [#allocation4], 0
    // Predicated region
    $region2: #{tpu_custom_call.1} parent=1 // pred_check
      _
    $region3: #{tpu_custom_call.1} parent=1 // pred_check_branch
      %11 = sbr.rel (0) target = $region5
    $region4: #{tpu_custom_call.1} parent=1 // pred_region
      %s13 = ssub.s32 192, 192
      %14 = vsyncadd [#allocation3], %s13
      %s16 = sshll.u32 [#allocation2], 4
      %s17 = int_to_ptr.vmem [resolvable:$true] %s16
      %19 = dma.hbm_to_vmem [thread:$0]  %s0, 192, %s17, [#allocation3]
    $region5: #{tpu_custom_call.1} parent=1 // pred_fallthru
      _
    // Predicated region
    $region6: #{tpu_custom_call.1} parent=1 // pred_check
      _
    $region7: #{tpu_custom_call.1} parent=1 // pred_check_branch
      %21 = sbr.rel (0) target = $region9
    $region8: #{tpu_custom_call.1} parent=1 // pred_region
      %s23 = ssub.s32 192, 192
      %24 = vsyncadd [#allocation6], %s23
      %s26 = sshll.u32 [#allocation5], 4
      %s27 = int_to_ptr.vmem [resolvable:$true] %s26
      %29 = dma.hbm_to_vmem [thread:$0]  %s1, 192, %s27, [#allocation6]
    $region9: #{tpu_custom_call.1} parent=1 // pred_fallthru
      _
    // Predicated region
    $region10: #{tpu_custom_call.1} parent=1 // pred_check
      _
    $region11: #{tpu_custom_call.1} parent=1 // pred_check_branch
      %31 = sbr.rel (0) target = $region13
    $region12: #{tpu_custom_call.1} parent=1 // pred_region
      %32 = dma.done [#allocation3], 192
    $region13: #{tpu_custom_call.1} parent=1 // pred_fallthru
      _
    // Predicated region
    $region14: #{tpu_custom_call.1} parent=1 // pred_check
      _
    $region15: #{tpu_custom_call.1} parent=1 // pred_check_branch
      %34 = sbr.rel (0) target = $region17
    $region16: #{tpu_custom_call.1} parent=1 // pred_region
      %35 = dma.done [#allocation6], 192
    $region17: #{tpu_custom_call.1} parent=1 // pred_fallthru
      _
    %v36 = vld [vmem:[#allocation2] sm:$0xff]
    %v37 = vld [vmem:[#allocation2 + $0x8] sm:$0xf]
    %38 = vst [vmem:[#allocation7] sm:$0xff] %v36
    %39 = vst [vmem:[#allocation7 + $0x8] sm:$0xf] %v37
    %v40 = vld [vmem:[#allocation5] sm:$0xff]
    %v41 = vld [vmem:[#allocation5 + $0x8] sm:$0xf]
    %42 = vst [vmem:[#allocation7 + $0xc] sm:$0xff] %v40
    %43 = vst [vmem:[#allocation7 + $0x14] sm:$0xf] %v41
    %44 = vst [vmem:[#allocation7 + $0x18] sm:$0xff] %v36
    %45 = vst [vmem:[#allocation7 + $0x20] sm:$0xf] %v37
    // Predicated region
    $region18: #{tpu_custom_call.1} parent=1 // pred_check
      _
    $region19: #{tpu_custom_call.1} parent=1 // pred_check_branch
      %47 = sbr.rel (0) target = $region21
    $region20: #{tpu_custom_call.1} parent=1 // pred_region
      %s49 = ssub.s32 576, 576
      %50 = vsyncadd [#allocation4], %s49
      %s52 = sshll.u32 [#allocation7], 4
      %s53 = int_to_ptr.vmem [resolvable:$true] %s52
      %55 = dma.vmem_to_hbm [thread:$0]  %s53, 576, %s2, [#allocation4]
    $region21: #{tpu_custom_call.1} parent=1 // pred_fallthru
      _
    // Predicated region
    $region22: #{tpu_custom_call.1} parent=1 // pred_check
      _
    $region23: #{tpu_custom_call.1} parent=1 // pred_check_branch
      %57 = sbr.rel (0) target = $region25
    $region24: #{tpu_custom_call.1} parent=1 // pred_region
      %58 = dma.done [#allocation4], 576
    $region25: #{tpu_custom_call.1} parent=1 // pred_fallthru
      _
    %59 = vsyncpa [#allocation3], 1
    %60 = vsyncpa [#allocation6], 1
    %61 = vsyncpa [#allocation4], 1

</llo_original>
